<compile_context>
chip_gen: v6e
topology: v6e:2x2x1
jax: 0.10.0
libtpu: 0.0.40
codegen_flags: <defaults>
</compile_context>

<pallas_src>
import functools

import jax
import jax.numpy as jnp
from jax.experimental import pallas as pl
from jax.experimental.pallas import tpu as pltpu

_LANE = 128
_SUBLANE = 8
_MAX_TILE = 512
_VMEM_LIMIT_BYTES = 32 * 1024 * 1024
_RESIDENT_MAX = 1024  # max padded M for the VMEM-resident phase-2 path (f32)


def _round_up(x: int, m: int) -> int:
    return (x + m - 1) // m * m


def _pad2d(x, rows: int, cols: int):
    r, c = x.shape
    if r == rows and c == cols:
        return x
    return jnp.pad(x, ((0, rows - r), (0, cols - c)))


def _choose_tile(dim: int, align: int, max_tile: int = _MAX_TILE):
    """Pick (tile, padded_dim): tile is a multiple of `align`, divides
    padded_dim exactly, and padded_dim is only the minimal aligned padding."""
    dp = _round_up(dim, align)
    if dp <= max_tile:
        return dp, dp
    t = max_tile - (max_tile % align)
    while t >= align:
        if dp % t == 0:
            return t, dp
        t -= align
    return align, dp  # unreachable (t == align always divides dp), but safe


def _mm_kernel_f32_out(a_ref, b_ref, o_ref):
    """Tiled GEMM step; the f32 output block doubles as the accumulator
    (its block index is constant along the k grid axis -> VMEM-resident)."""
    @pl.when(pl.program_id(2) == 0)
    def _():
        o_ref[...] = jnp.zeros_like(o_ref)

    o_ref[...] += jnp.dot(a_ref[...], b_ref[...],
                          preferred_element_type=jnp.float32)


def _mm_kernel_acc(a_ref, b_ref, o_ref, acc_ref):
    """Tiled GEMM step with an explicit f32 accumulator (non-f32 outputs)."""
    @pl.when(pl.program_id(2) == 0)
    def _():
        acc_ref[...] = jnp.zeros_like(acc_ref)

    acc_ref[...] += jnp.dot(a_ref[...], b_ref[...],
                            preferred_element_type=jnp.float32)

    @pl.when(pl.program_id(2) == pl.num_programs(2) - 1)
    def _():
        o_ref[...] = acc_ref[...].astype(o_ref.dtype)


def tiled_matmul_padded(a, b, *, out_dtype=None, m_align=_SUBLANE):
    """C_p = A @ B, returned zero-padded to (Mp, Np).

    Zero padding is exact for matmul; the caller slices back to the logical
    shape only when it actually needs to (so intermediates stay padded)."""
    M, K = a.shape
    K2, N = b.shape
    assert K == K2, "inner dimensions must match"
    out_dtype = a.dtype if out_dtype is None else out_dtype

    tm, Mp = _choose_tile(M, m_align)
    tk, Kp = _choose_tile(K, _LANE)
    tn, Np = _choose_tile(N, _LANE)

    # Keep >=2 programs on the parallel (i, j) axes when the problem allows it
    # so both TensorCores are used on megacore parts (v7x).
    if Mp // tm == 1 and Np // tn == 1:
        if tn >= 2 * _LANE and (tn // 2) % _LANE == 0:
            tn //= 2
        elif tm >= 2 * _SUBLANE and (tm // 2) % _SUBLANE == 0:
            tm //= 2

    a_p = _pad2d(a, Mp, Kp)
    b_p = _pad2d(b, Kp, Np)
    grid = (Mp // tm, Np // tn, Kp // tk)

    in_item = jnp.dtype(a.dtype).itemsize
    out_item = jnp.dtype(out_dtype).itemsize
    cost = pl.CostEstimate(
        flops=2 * Mp * Np * Kp,
        transcendentals=0,
        # A is streamed once per output column-block, B once per row-block.
        bytes_accessed=Mp * Kp * in_item * (Np // tn)
        + Kp * Np * in_item * (Mp // tm)
        + Mp * Np * out_item,
    )

    if jnp.dtype(out_dtype) == jnp.dtype(jnp.float32):
        kernel, scratch = _mm_kernel_f32_out, []
    else:
        kernel, scratch = _mm_kernel_acc, [pltpu.VMEM((tm, tn), jnp.float32)]

    return pl.pallas_call(
        kernel,
        out_shape=jax.ShapeDtypeStruct((Mp, Np), out_dtype),
        grid_spec=pltpu.PrefetchScalarGridSpec(
            num_scalar_prefetch=0,
            grid=grid,
            in_specs=[
                pl.BlockSpec((tm, tk), lambda i, j, k: (i, k)),
                pl.BlockSpec((tk, tn), lambda i, j, k: (k, j)),
            ],
            out_specs=pl.BlockSpec((tm, tn), lambda i, j, k: (i, j)),
            scratch_shapes=scratch,
        ),
        compiler_params=pltpu.CompilerParams(
            dimension_semantics=("parallel", "parallel", "arbitrary"),
            vmem_limit_bytes=_VMEM_LIMIT_BYTES,
        ),
        cost_estimate=cost,
    )(a_p, b_p)


def _cat_s1_s1sq_kernel(s1_ref, out_ref, *, tile, half_j):
    """One (tile, tile) tile of out = [s1 | s1 @ s1].

    s1 is a single VMEM-resident (P, P) block (constant index_map, fetched
    once).  Left-half tiles are copied from it; right-half tiles are a
    full-reduction dot sliced directly out of the resident block."""
    i = pl.program_id(0)
    j = pl.program_id(1)
    row0 = pl.multiple_of(i * tile, tile)

    @pl.when(j < half_j)
    def _():
        col0 = pl.multiple_of(j * tile, tile)
        out_ref[...] = s1_ref[pl.ds(row0, tile),
                              pl.ds(col0, tile)].astype(out_ref.dtype)

    @pl.when(j >= half_j)
    def _():
        col0 = pl.multiple_of((j - half_j) * tile, tile)
        out_ref[...] = jnp.dot(
            s1_ref[pl.ds(row0, tile), :],
            s1_ref[:, pl.ds(col0, tile)],
            preferred_element_type=jnp.float32,
        ).astype(out_ref.dtype)


def _cat_s1_s1sq_resident(s1_p, out_dtype):
    """out_p = [s1_p | s1_p @ s1_p]  of shape (P, 2P), s1_p pinned in VMEM."""
    P = s1_p.shape[0]
    assert s1_p.shape == (P, P) and P % _LANE == 0

    # Largest output tile (multiple of 128, <= 512) that divides P.
    tile = _LANE
    t = min(_MAX_TILE, P)
    while t >= _LANE:
        if P % t == 0:
            tile = t
            break
        t -= _LANE
    half_j = P // tile
    grid = (P // tile, 2 * half_j)

    cost = pl.CostEstimate(
        flops=2 * P * P * P,
        transcendentals=0,
        bytes_accessed=P * P * jnp.dtype(s1_p.dtype).itemsize
        + 2 * P * P * jnp.dtype(out_dtype).itemsize,
    )

    return pl.pallas_call(
        functools.partial(_cat_s1_s1sq_kernel, tile=tile, half_j=half_j),
        out_shape=jax.ShapeDtypeStruct((P, 2 * P), out_dtype),
        grid_spec=pltpu.PrefetchScalarGridSpec(
            num_scalar_prefetch=0,
            grid=grid,
            in_specs=[pl.BlockSpec((P, P), lambda i, j: (0, 0))],
            out_specs=pl.BlockSpec((tile, tile), lambda i, j: (i, j)),
        ),
        compiler_params=pltpu.CompilerParams(
            dimension_semantics=("parallel", "parallel"),
            vmem_limit_bytes=_VMEM_LIMIT_BYTES,
        ),
        cost_estimate=cost,
    )(s1_p)


def cat_mm(x1, x2):
    """out = concat([x1 @ x2, (x1 @ x2) @ (x1 @ x2)], axis=1)."""
    M, K = x1.shape
    K2, N = x2.shape
    assert K == K2 and N == M, "forward requires x1:(M, K), x2:(K, M)"
    dtype = x1.dtype

    # Phase 1: s1 = x1 @ x2, kept padded to (P, P) with P = round_up(M, 128)
    # (zero padding is exact for matmul and for the s1 @ s1 feedback).
    s1_p = tiled_matmul_padded(x1, x2, out_dtype=dtype, m_align=_LANE)
    P = s1_p.shape[0]

    if P <= _RESIDENT_MAX:
        # Phase 2: s1 pinned in VMEM; [s1 | s1 @ s1] written straight into one
        # (P, 2P) buffer -> no jnp.concatenate, s1 read from HBM exactly once.
        out_p = _cat_s1_s1sq_resident(s1_p, dtype)
        if P == M:
            return out_p
        # Padding was needed: assemble the logical halves (tiny, cheap op).
        return jnp.concatenate([out_p[:M, :M], out_p[:M, P:P + M]], axis=1)

    # Large-M fallback: stream s1 through a second tiled GEMM (s1 stays
    # padded; no slice / re-pad between the phases).
    # TODO(synk): for very large M also write s2 directly into the right half
    # of the final buffer to drop this concat (one extra HBM pass).
    s2_p = tiled_matmul_padded(s1_p, s1_p, out_dtype=dtype, m_align=_LANE)
    return jnp.concatenate([s1_p[:M, :M], s2_p[:M, :M]], axis=1)


def cat_mm_ref(x1, x2):
    s1 = x1 @ x2
    return jnp.concatenate([s1, s1 @ s1], axis=1)


if __name__ == "__main__":
    key = jax.random.PRNGKey(0)
    cat_mm_jit = jax.jit(cat_mm)

    # Case 1: tiny shape (spirit of the original torch snippet); exercises the
    #         padding + half-reassembly path (M=8 -> P=128, K=16 -> 128).
    # Case 2: lane-aligned shape; exercises unpadded K (384 stays 384), the
    #         parallel-axis split, and the VMEM-resident fused-output phase 2.
    for (M, K) in [(8, 16), (256, 384)]:
        k1, k2 = jax.random.split(jax.random.fold_in(key, M))
        x1 = jax.random.normal(k1, (M, K), dtype=jnp.float32)
        x2 = jax.random.normal(k2, (K, M), dtype=jnp.float32)

        out = jax.block_until_ready(cat_mm_jit(x1, x2))
        ref = cat_mm_ref(x1, x2)

        assert out.shape == (M, 2 * M)
        max_ref = jnp.max(jnp.abs(ref))
        max_err = jnp.max(jnp.abs(out - ref))
        # Tolerance covers possible lower-precision passes in the XLA reference.
        assert max_err <= 2e-2 * (max_ref + 1.0), (
            f"mismatch at M={M}, K={K}: max_err={max_err}, max_ref={max_ref}")

    print("KERNEL_OK")
</pallas_src>

<mosaic_0001>
module attributes {stable_mosaic.version = 11 : i64} {
  func.func @_mm_kernel_f32_out(%arg0: i32, %arg1: i32, %arg2: i32, %arg3: memref<64x128xf32, #tpu.memory_space<vmem>>, %arg4: memref<128x128xf32, #tpu.memory_space<vmem>>, %arg5: memref<64x128xf32, #tpu.memory_space<vmem>>) attributes {dimension_semantics = [#tpu.dimension_semantics<parallel>, #tpu.dimension_semantics<parallel>, #tpu.dimension_semantics<arbitrary>], iteration_bounds = array<i64: 2, 1, 1>, scalar_prefetch = 0 : i64, scratch_operands = 0 : i64, tpu.core_type = #tpu.core_type<tc>, window_params = [{transform_indices = @transform_0, window_bounds = array<i64: 64, 128>}, {transform_indices = @transform_1, window_bounds = array<i64: 128, 128>}, {transform_indices = @transform_2, window_bounds = array<i64: 64, 128>}]} {
    %c0_i32 = arith.constant 0 : i32
    %0 = arith.cmpi eq, %arg2, %c0_i32 : i32
    %1 = arith.extui %0 : i1 to i32
    %c0_i32_0 = arith.constant 0 : i32
    %2 = arith.cmpi ne, %1, %c0_i32_0 : i32
    scf.if %2 {
      %cst_8 = arith.constant 0.000000e+00 : f32
      %9 = vector.broadcast %cst_8 : f32 to vector<64x128xf32>
      %c0_9 = arith.constant 0 : index
      %c0_10 = arith.constant 0 : index
      %10 = vector.load %arg5[%c0_9, %c0_10] : memref<64x128xf32, #tpu.memory_space<vmem>>, vector<64x128xf32>
      tpu.vector_store %arg5[%c0_9, %c0_10], %9 {strides = array<i32>} : memref<64x128xf32, #tpu.memory_space<vmem>>, vector<64x128xf32>,
    } else {
    }
    %c0 = arith.constant 0 : index
    %c0_1 = arith.constant 0 : index
    %3 = vector.load %arg5[%c0, %c0_1] : memref<64x128xf32, #tpu.memory_space<vmem>>, vector<64x128xf32>
    %c0_2 = arith.constant 0 : index
    %c0_3 = arith.constant 0 : index
    %4 = vector.load %arg3[%c0_2, %c0_3] : memref<64x128xf32, #tpu.memory_space<vmem>>, vector<64x128xf32>
    %c0_4 = arith.constant 0 : index
    %c0_5 = arith.constant 0 : index
    %5 = vector.load %arg4[%c0_4, %c0_5] : memref<128x128xf32, #tpu.memory_space<vmem>>, vector<128x128xf32>
    %cst = arith.constant dense<0.000000e+00> : vector<64x128xf32>
    %6 = tpu.matmul %4, %5, %cst {dimension_numbers = #tpu.dot_dimension_numbers<[1], [0], [0], [1], [0, 0, 1, 1], [], []>} : vector<64x128xf32>, vector<128x128xf32>, vector<64x128xf32> -> vector<64x128xf32>
    %7 = arith.addf %3, %6 : vector<64x128xf32>
    %c0_6 = arith.constant 0 : index
    %c0_7 = arith.constant 0 : index
    %8 = vector.load %arg5[%c0_6, %c0_7] : memref<64x128xf32, #tpu.memory_space<vmem>>, vector<64x128xf32>
    tpu.vector_store %arg5[%c0_6, %c0_7], %7 {strides = array<i32>} : memref<64x128xf32, #tpu.memory_space<vmem>>, vector<64x128xf32>,
    return
  }
  func.func @transform_0(%arg0: i32, %arg1: i32, %arg2: i32) -> (i32, i32) {
    %c0_i32 = arith.constant 0 : i32
    return %arg0, %arg2 : i32, i32
  }
  func.func @transform_1(%arg0: i32, %arg1: i32, %arg2: i32) -> (i32, i32) {
    %c0_i32 = arith.constant 0 : i32
    return %arg2, %arg1 : i32, i32
  }
  func.func @transform_2(%arg0: i32, %arg1: i32, %arg2: i32) -> (i32, i32) {
    %c0_i32 = arith.constant 0 : i32
    return %arg0, %arg1 : i32, i32
  }
}

module attributes {stable_mosaic.version = 11 : i64} {
  func.func @_cat_s1_s1sq_kernel(%arg0: i32, %arg1: i32, %arg2: memref<128x128xf32, #tpu.memory_space<vmem>>, %arg3: memref<128x128xf32, #tpu.memory_space<vmem>>) attributes {dimension_semantics = [#tpu.dimension_semantics<parallel>, #tpu.dimension_semantics<parallel>], iteration_bounds = array<i64: 1, 2>, scalar_prefetch = 0 : i64, scratch_operands = 0 : i64, tpu.core_type = #tpu.core_type<tc>, window_params = [{pipeline_mode = #tpu.pipeline_mode<synchronous>, transform_indices = @transform_0, window_bounds = array<i64: 128, 128>}, {transform_indices = @transform_1, window_bounds = array<i64: 128, 128>}]} {
    %c128_i32 = arith.constant 128 : i32
    %0 = arith.muli %arg0, %c128_i32 : i32
    %1 = tpu.assume_multiple %0, 128 : i32
    %c1_i32 = arith.constant 1 : i32
    %2 = arith.cmpi slt, %arg1, %c1_i32 : i32
    %3 = arith.extui %2 : i1 to i32
    %c0_i32 = arith.constant 0 : i32
    %4 = arith.cmpi ne, %3, %c0_i32 : i32
    scf.if %4 {
      %c128_i32_2 = arith.constant 128 : i32
      %8 = arith.muli %arg1, %c128_i32_2 : i32
      %9 = tpu.assume_multiple %8, 128 : i32
      %10 = arith.index_cast %1 : i32 to index
      %11 = arith.index_cast %9 : i32 to index
      %12 = vector.load %arg2[%10, %11] : memref<128x128xf32, #tpu.memory_space<vmem>>, vector<128x128xf32>
      %c0 = arith.constant 0 : index
      %c0_3 = arith.constant 0 : index
      %13 = vector.load %arg3[%c0, %c0_3] : memref<128x128xf32, #tpu.memory_space<vmem>>, vector<128x128xf32>
      tpu.vector_store %arg3[%c0, %c0_3], %12 {strides = array<i32>} : memref<128x128xf32, #tpu.memory_space<vmem>>, vector<128x128xf32>,
    } else {
    }
    %c1_i32_0 = arith.constant 1 : i32
    %5 = arith.cmpi sge, %arg1, %c1_i32_0 : i32
    %6 = arith.extui %5 : i1 to i32
    %c0_i32_1 = arith.constant 0 : i32
    %7 = arith.cmpi ne, %6, %c0_i32_1 : i32
    scf.if %7 {
      %c1_i32_2 = arith.constant 1 : i32
      %8 = arith.subi %arg1, %c1_i32_2 : i32
      %c128_i32_3 = arith.constant 128 : i32
      %9 = arith.muli %8, %c128_i32_3 : i32
      %10 = tpu.assume_multiple %9, 128 : i32
      %11 = arith.index_cast %1 : i32 to index
      %c0 = arith.constant 0 : index
      %12 = vector.load %arg2[%11, %c0] : memref<128x128xf32, #tpu.memory_space<vmem>>, vector<128x128xf32>
      %c0_4 = arith.constant 0 : index
      %13 = arith.index_cast %10 : i32 to index
      %14 = vector.load %arg2[%c0_4, %13] : memref<128x128xf32, #tpu.memory_space<vmem>>, vector<128x128xf32>
      %cst = arith.constant dense<0.000000e+00> : vector<128x128xf32>
      %15 = tpu.matmul %12, %14, %cst {dimension_numbers = #tpu.dot_dimension_numbers<[1], [0], [0], [1], [0, 0, 1, 1], [], []>} : vector<128x128xf32>, vector<128x128xf32>, vector<128x128xf32> -> vector<128x128xf32>
      %c0_5 = arith.constant 0 : index
      %c0_6 = arith.constant 0 : index
      %16 = vector.load %arg3[%c0_5, %c0_6] : memref<128x128xf32, #tpu.memory_space<vmem>>, vector<128x128xf32>
      tpu.vector_store %arg3[%c0_5, %c0_6], %15 {strides = array<i32>} : memref<128x128xf32, #tpu.memory_space<vmem>>, vector<128x128xf32>,
    } else {
    }
    return
  }
  func.func @transform_0(%arg0: i32, %arg1: i32) -> (i32, i32) {
    %c0_i32 = arith.constant 0 : i32
    %c0_i32_0 = arith.constant 0 : i32
    %c0_i32_1 = arith.constant 0 : i32
    return %c0_i32, %c0_i32_0 : i32, i32
  }
  func.func @transform_1(%arg0: i32, %arg1: i32) -> (i32, i32) {
    %c0_i32 = arith.constant 0 : i32
    return %arg0, %arg1 : i32, i32
  }
}

</mosaic_0001>

<llo_original>
// kernel: cat_mm.2
$region0: #{cat_mm.2}
  #allocation0 [shape = 'u32[]', space=smem, size = 0x4, offset = 0x4, fixed_abs, tag = 'smem constant byte address 0x4 - core index']
  #allocation1 [shape = 'u32[144,128]{1,0:T(1,128)}', space=vmem, size = 0x12000, scoped, tag = 'internal scratch']
  %s0 = inlined_call_operand.vmem [shape: f32[128,128], index: 0, kind: input, shape index: {}]
  %s1 = inlined_call_operand.vmem [shape: f32[128,128], index: 1, kind: input, shape index: {}]
  %s2 = inlined_call_operand.vmem [shape: f32[128,128], index: 2, kind: output, shape index: {}]
  %s3 = sld [smem:[#allocation0]]
  $region45: #{cat_mm.2} parent=0
    _
  %s5 = ssub.s32 1, %s3
  %s6 = scalar_select 0, %s5, %s3
  loop: start=0, step=1, limit=4
  $region2: #{cat_mm.2} parent=0 // loop_pre_header
    _
  $region3: #{cat_mm.2} parent=0 // loop_header
    %s8 = sphi 0, %s12
    %p9 = scmp.ge.s32.totalorder %s8, 4
    %s15 = sphi 0, %s34
    %s16 = sphi 0, %s30
    %s17 = sphi 0, %s26
    %s18 = sphi 0, %s15
    %s19 = sphi 0, %s16
    %s20 = sphi 0, %s17
    %s21 = sphi 0, %s18
    %s22 = sphi 0, %s19
    %s23 = sphi 0, %s20
    %s39 = sphi 0, %s41
    %s42 = sphi 0, %s39
    %s43 = sphi 0, %s42
    %s59 = sphi 0, %s43
    %s67 = sphi 0, %s69
    %s70 = sphi 0, %s67
    %s71 = sphi 0, %s70
    %s87 = sphi 0, %s71
    %s95 = sphi 0, %s97
    %s98 = sphi 0, %s95
    %s99 = sphi 0, %s98
    %s115 = sphi 0, %s99
  $region4: #{cat_mm.2} parent=0 // loop_header_branch
    %11 = sbr.rel (%p9) target = $region8
  $region5: #{cat_mm.2} parent=0 // loop_body
    %s13 = ssub.s32 %s8, 1
    %s14 = ssub.s32 %s8, 2
    %s24 = sadd.s32 1, %s17
    %p25 = scmp.ge.s32.totalorder %s24, 1
    %s26 = scalar_select %p25, 0, %s24
    %s27 = sadd.s32 1, %s16
    %s28 = scalar_select %p25, %s27, %s16
    %p29 = scmp.ge.s32.totalorder %s28, 1
    %s30 = scalar_select %p29, 0, %s28
    %s31 = sadd.s32 1, %s15
    %s32 = scalar_select %p29, %s31, %s15
    %p33 = scmp.ge.s32.totalorder %s32, 2
    %s34 = scalar_select %p33, 0, %s32
    %s35 = ssub.s32 %s15, %s34
    %s36 = ssub.s32 %s17, %s26
    %s37 = sor.u32 %s35, %s36
    %p38 = scmp.eq.s32.totalorder %s37, 0
    %s40 = sadd.s32 %s39, 1
    %s41 = scalar_select %p38, %s39, %s40
    %p44 = pneg %p38
    %p45 = scmp.eq.s32.totalorder %s8, 1
    %p46 = por %p44, %p45
    %p47 = scmp.ne.s32.totalorder %s39, %s42
    %p48 = scmp.eq.s32.totalorder %s8, 0
    %p49 = por %p47, %p48
    %p50 = scmp.ne.s32.totalorder %s39, %s42
    %p51 = scmp.eq.s32.totalorder %s13, 1
    %p52 = por %p50, %p51
    %p53 = scmp.ne.s32.totalorder %s42, %s43
    %p54 = scmp.eq.s32.totalorder %s13, 0
    %p55 = por %p53, %p54
    %p56 = scmp.ne.s32.totalorder %s42, %s43
    %p57 = scmp.eq.s32.totalorder %s14, 1
    %p58 = por %p56, %p57
    %p60 = scmp.ne.s32.totalorder %s43, %s59
    %p61 = scmp.eq.s32.totalorder %s14, 0
    %p62 = por %p60, %p61
    %s63 = ssub.s32 %s17, %s26
    %s64 = ssub.s32 %s16, %s30
    %s65 = sor.u32 %s63, %s64
    %p66 = scmp.eq.s32.totalorder %s65, 0
    %s68 = sadd.s32 %s67, 1
    %s69 = scalar_select %p66, %s67, %s68
    %p72 = pneg %p66
    %p73 = scmp.eq.s32.totalorder %s8, 1
    %p74 = por %p72, %p73
    %p75 = scmp.ne.s32.totalorder %s67, %s70
    %p76 = scmp.eq.s32.totalorder %s8, 0
    %p77 = por %p75, %p76
    %p78 = scmp.ne.s32.totalorder %s67, %s70
    %p79 = scmp.eq.s32.totalorder %s13, 1
    %p80 = por %p78, %p79
    %p81 = scmp.ne.s32.totalorder %s70, %s71
    %p82 = scmp.eq.s32.totalorder %s13, 0
    %p83 = por %p81, %p82
    %p84 = scmp.ne.s32.totalorder %s70, %s71
    %p85 = scmp.eq.s32.totalorder %s14, 1
    %p86 = por %p84, %p85
    %p88 = scmp.ne.s32.totalorder %s71, %s87
    %p89 = scmp.eq.s32.totalorder %s14, 0
    %p90 = por %p88, %p89
    %s91 = ssub.s32 %s15, %s34
    %s92 = ssub.s32 %s16, %s30
    %s93 = sor.u32 %s91, %s92
    %p94 = scmp.eq.s32.totalorder %s93, 0
    %s96 = sadd.s32 %s95, 1
    %s97 = scalar_select %p94, %s95, %s96
    %p100 = pneg %p94
    %p101 = scmp.eq.s32.totalorder %s8, 1
    %p102 = por %p100, %p101
    %p103 = scmp.ne.s32.totalorder %s95, %s98
    %p104 = scmp.eq.s32.totalorder %s8, 0
    %p105 = por %p103, %p104
    %p106 = scmp.ne.s32.totalorder %s95, %s98
    %p107 = scmp.eq.s32.totalorder %s13, 1
    %p108 = por %p106, %p107
    %p109 = scmp.ne.s32.totalorder %s98, %s99
    %p110 = scmp.eq.s32.totalorder %s13, 0
    %p111 = por %p109, %p110
    %p112 = scmp.ne.s32.totalorder %s98, %s99
    %p113 = scmp.eq.s32.totalorder %s14, 1
    %p114 = por %p112, %p113
    %p116 = scmp.ne.s32.totalorder %s99, %s115
    %p117 = scmp.eq.s32.totalorder %s14, 0
    %p118 = por %p116, %p117
    %p119 = scmp.le.s32.totalorder 1, %s8
    %p120 = scmp.lt.s32.totalorder %s8, 3
    %p121 = pnand %p119, %p120
    %p122 = pneg %p121
    // Predicated region
    $region9: #{cat_mm.2} parent=5 // pred_check
      _
    $region10: #{cat_mm.2} parent=5 // pred_check_branch
      %124 = sbr.rel (%p121) target = $region12
    $region11: #{cat_mm.2} parent=5 // pred_region
      %s125 = ssub.s32 %s8, 1
      // Predicated region
      $region13: #{cat_mm.2} parent=11 // pred_check
        %p126 = pneg %p83
      $region14: #{cat_mm.2} parent=11 // pred_check_branch
        %128 = sbr.rel (%p126) target = $region16
      $region15: #{cat_mm.2} parent=11 // pred_region
        %s129 = smul.u32 16, %s20
        %p130 = scmp.lt.s32.totalorder %s129, 15
        %s131 = scalar_select %p130, %s129, 15
        %p132 = scmp.lt.s32.totalorder %s19, 0
        %s133 = scalar_select %p132, %s19, 0
        %s134 = sadd.s32 %s133, %s131
        %s135 = smul.addr %s134, 8
        %s136 = scalar_lea.vmem %s1, %s135
        %s137 = smul.u32 16, %s20
      $region16: #{cat_mm.2} parent=11 // pred_fallthru
        _
    $region12: #{cat_mm.2} parent=5 // pred_fallthru
      _
    %p138 = scmp.lt.s32.totalorder %s8, 2
    // Predicated region
    $region17: #{cat_mm.2} parent=5 // pred_check
      %p139 = pneg %p138
    $region18: #{cat_mm.2} parent=5 // pred_check_branch
      %141 = sbr.rel (%p139) target = $region20
    $region19: #{cat_mm.2} parent=5 // pred_region
      // Predicated region
      $region21: #{cat_mm.2} parent=19 // pred_check
        %p142 = pneg %p49
      $region22: #{cat_mm.2} parent=19 // pred_check_branch
        %144 = sbr.rel (%p142) target = $region24
      $region23: #{cat_mm.2} parent=19 // pred_region
        %s145 = smul.u32 8, %s15
        %p146 = scmp.lt.s32.totalorder %s145, 15
        %s147 = scalar_select %p146, %s145, 15
        %p148 = scmp.lt.s32.totalorder %s17, 0
        %s149 = scalar_select %p148, %s17, 0
        %s150 = sadd.s32 %s149, %s147
        %s151 = smul.addr %s150, 8
        %s152 = scalar_lea.vmem %s0, %s151
        %s153 = smul.u32 8, %s15
      $region24: #{cat_mm.2} parent=19 // pred_fallthru
        _
    $region20: #{cat_mm.2} parent=5 // pred_fallthru
      _
    %p154 = scmp.le.s32.totalorder 1, %s8
    %p155 = scmp.lt.s32.totalorder %s8, 3
    %p156 = pnand %p154, %p155
    %p157 = pneg %p156
    // Predicated region
    $region25: #{cat_mm.2} parent=5 // pred_check
      _
    $region26: #{cat_mm.2} parent=5 // pred_check_branch
      %159 = sbr.rel (%p156) target = $region28
    $region27: #{cat_mm.2} parent=5 // pred_region
      %s160 = ssub.s32 %s8, 1
      %s161 = smul.u32 8, %s18
      %p162 = scmp.lt.s32.totalorder %s161, 15
      %s163 = scalar_select %p162, %s161, 15
      %p164 = scmp.lt.s32.totalorder %s20, 0
      %s165 = scalar_select %p164, %s20, 0
      %s166 = sadd.s32 %s165, %s163
      %s167 = smul.addr %s166, 8
      %s168 = scalar_lea.vmem %s0, %s167
      %p169 = pneg %p55
      %p170 = pneg %p52
      %s171 = smul.u32 16, %s20
      %p172 = scmp.lt.s32.totalorder %s171, 15
      %s173 = scalar_select %p172, %s171, 15
      %p174 = scmp.lt.s32.totalorder %s19, 0
      %s175 = scalar_select %p174, %s19, 0
      %s176 = sadd.s32 %s175, %s173
      %s177 = smul.addr %s176, 8
      %s178 = scalar_lea.vmem %s1, %s177
      %p179 = pneg %p83
      %p180 = pneg %p80
      %p181 = pneg %p111
      %p182 = pneg %p108
      %s183 = smul.u32 8, %s18
      %p184 = scmp.lt.s32.totalorder %s183, 15
      %s185 = scalar_select %p184, %s183, 15
      %p186 = scmp.lt.s32.totalorder %s19, 0
      %s187 = scalar_select %p186, %s19, 0
      %s188 = sadd.s32 %s187, %s185
      %s189 = smul.addr %s188, 8
      %s190 = scalar_lea.vmem %s2, %s189
      %s191 = smul.u32 8, %s18
      %p192 = scmp.lt.s32.totalorder %s191, 15
      %s193 = scalar_select %p192, %s191, 15
      %p194 = scmp.lt.s32.totalorder %s20, 0
      %s195 = scalar_select %p194, %s20, 0
      %s196 = sadd.s32 %s195, %s193
      %s197 = smul.addr %s196, 8
      %s198 = scalar_lea.vmem %s0, %s197
      %s199 = smul.u32 8, %s18
      %s200 = smul.u32 16, %s20
      %p201 = scmp.lt.s32.totalorder %s200, 15
      %s202 = scalar_select %p201, %s200, 15
      %p203 = scmp.lt.s32.totalorder %s19, 0
      %s204 = scalar_select %p203, %s19, 0
      %s205 = sadd.s32 %s204, %s202
      %s206 = smul.addr %s205, 8
      %s207 = scalar_lea.vmem %s1, %s206
      %s208 = smul.u32 16, %s20
      %s209 = smul.u32 8, %s18
      %p210 = scmp.lt.s32.totalorder %s209, 15
      %s211 = scalar_select %p210, %s209, 15
      %p212 = scmp.lt.s32.totalorder %s19, 0
      %s213 = scalar_select %p212, %s19, 0
      %s214 = sadd.s32 %s213, %s211
      %s215 = smul.addr %s214, 8
      %s216 = scalar_lea.vmem %s2, %s215
      %s217 = smul.u32 8, %s18
      %p218 = scmp.eq.s32.totalorder %s20, 0
      // Predicated region
      $region29: #{cat_mm.2} parent=27 // pred_check
        %p219 = pneg %p218
      $region30: #{cat_mm.2} parent=27 // pred_check_branch
        %221 = sbr.rel (%p219) target = $region32
      $region31: #{cat_mm.2} parent=27 // pred_region
        %222 = vst [vmem:[%s216] sm:$0xff] 0.0
        %223 = vst [vmem:[%s216 + $0x8] sm:$0xff] 0.0
        %224 = vst [vmem:[%s216 + $0x10] sm:$0xff] 0.0
        %225 = vst [vmem:[%s216 + $0x18] sm:$0xff] 0.0
        %226 = vst [vmem:[%s216 + $0x20] sm:$0xff] 0.0
        %227 = vst [vmem:[%s216 + $0x28] sm:$0xff] 0.0
        %228 = vst [vmem:[%s216 + $0x30] sm:$0xff] 0.0
        %229 = vst [vmem:[%s216 + $0x38] sm:$0xff] 0.0
      $region32: #{cat_mm.2} parent=27 // pred_fallthru
        _
      %v230 = vld [vmem:[%s216] sm:$0xff]
      %v231 = vld [vmem:[%s216 + $0x8] sm:$0xff]
      %v232 = vld [vmem:[%s216 + $0x10] sm:$0xff]
      %v233 = vld [vmem:[%s216 + $0x18] sm:$0xff]
      %v234 = vld [vmem:[%s216 + $0x20] sm:$0xff]
      %v235 = vld [vmem:[%s216 + $0x28] sm:$0xff]
      %v236 = vld [vmem:[%s216 + $0x30] sm:$0xff]
      %v237 = vld [vmem:[%s216 + $0x38] sm:$0xff]
      %v238 = vld [vmem:[%s198] sm:$0xff]
      %v239 = vld [vmem:[%s198 + $0x8] sm:$0xff]
      %v240 = vld [vmem:[%s198 + $0x10] sm:$0xff]
      %v241 = vld [vmem:[%s198 + $0x18] sm:$0xff]
      %v242 = vld [vmem:[%s198 + $0x20] sm:$0xff]
      %v243 = vld [vmem:[%s198 + $0x28] sm:$0xff]
      %v244 = vld [vmem:[%s198 + $0x30] sm:$0xff]
      %v245 = vld [vmem:[%s198 + $0x38] sm:$0xff]
      %v246 = vld [vmem:[%s207] sm:$0xff]
      %v247 = vld [vmem:[%s207 + $0x8] sm:$0xff]
      %v248 = vld [vmem:[%s207 + $0x10] sm:$0xff]
      %v249 = vld [vmem:[%s207 + $0x18] sm:$0xff]
      %v250 = vld [vmem:[%s207 + $0x20] sm:$0xff]
      %v251 = vld [vmem:[%s207 + $0x28] sm:$0xff]
      %v252 = vld [vmem:[%s207 + $0x30] sm:$0xff]
      %v253 = vld [vmem:[%s207 + $0x38] sm:$0xff]
      %v254 = vld [vmem:[%s207 + $0x40] sm:$0xff]
      %v255 = vld [vmem:[%s207 + $0x48] sm:$0xff]
      %v256 = vld [vmem:[%s207 + $0x50] sm:$0xff]
      %v257 = vld [vmem:[%s207 + $0x58] sm:$0xff]
      %v258 = vld [vmem:[%s207 + $0x60] sm:$0xff]
      %v259 = vld [vmem:[%s207 + $0x68] sm:$0xff]
      %v260 = vld [vmem:[%s207 + $0x70] sm:$0xff]
      %v261 = vld [vmem:[%s207 + $0x78] sm:$0xff]
      %262 = vmatprep.subr.mxu0 0.0
      %263 = vmatpush1.msra.mxu0 %v261
      %264 = vmatprep.subr.mxu0 0.0
      %265 = vmatpush1.msra.mxu0 %v260
      %266 = vmatprep.subr.mxu0 0.0
      %267 = vmatpush1.msra.mxu0 %v259
      %268 = vmatprep.subr.mxu0 0.0
      %269 = vmatpush1.msra.mxu0 %v258
      %270 = vmatprep.subr.mxu0 0.0
      %271 = vmatpush1.msra.mxu0 %v257
      %272 = vmatprep.subr.mxu0 0.0
      %273 = vmatpush1.msra.mxu0 %v256
      %274 = vmatprep.subr.mxu0 0.0
      %275 = vmatpush1.msra.mxu0 %v255
      %276 = vmatprep.subr.mxu0 0.0
      %277 = vmatpush1.msra.mxu0 %v254
      %278 = vmatprep.subr.mxu0 0.0
      %279 = vmatpush1.msra.mxu0 %v253
      %280 = vmatprep.subr.mxu0 0.0
      %281 = vmatpush1.msra.mxu0 %v252
      %282 = vmatprep.subr.mxu0 0.0
      %283 = vmatpush1.msra.mxu0 %v251
      %284 = vmatprep.subr.mxu0 0.0
      %285 = vmatpush1.msra.mxu0 %v250
      %286 = vmatprep.subr.mxu0 0.0
      %287 = vmatpush1.msra.mxu0 %v249
      %288 = vmatprep.subr.mxu0 0.0
      %289 = vmatpush1.msra.mxu0 %v248
      %290 = vmatprep.subr.mxu0 0.0
      %291 = vmatpush1.msra.mxu0 %v247
      %292 = vmatprep.subr.mxu0 0.0
      %293 = vmatpush1.msra.mxu0 %v246
      %294 = vmatprep.subr.mxu0 0.0
      %295 = vmatpush2.msra.mxu0 0.0
      %296 = vmatprep.subr.mxu0 0.0
      %297 = vmatpush2.msra.mxu0 0.0
      %298 = vmatprep.subr.mxu0 0.0
      %299 = vmatpush2.msra.mxu0 0.0
      %300 = vmatprep.subr.mxu0 0.0
      %301 = vmatpush2.msra.mxu0 0.0
      %302 = vmatprep.subr.mxu0 0.0
      %303 = vmatpush2.msra.mxu0 0.0
      %304 = vmatprep.subr.mxu0 0.0
      %305 = vmatpush2.msra.mxu0 0.0
      %306 = vmatprep.subr.mxu0 0.0
      %307 = vmatpush2.msra.mxu0 0.0
      %308 = vmatprep.subr.mxu0 0.0
      %309 = vmatpush2.msra.mxu0 0.0
      %310 = vmatprep.subr.mxu0 0.0
      %311 = vmatpush2.msra.mxu0 0.0
      %312 = vmatprep.subr.mxu0 0.0
      %313 = vmatpush2.msra.mxu0 0.0
      %314 = vmatprep.subr.mxu0 0.0
      %315 = vmatpush2.msra.mxu0 0.0
      %316 = vmatprep.subr.mxu0 0.0
      %317 = vmatpush2.msra.mxu0 0.0
      %318 = vmatprep.subr.mxu0 0.0
      %319 = vmatpush2.msra.mxu0 0.0
      %320 = vmatprep.subr.mxu0 0.0
      %321 = vmatpush2.msra.mxu0 0.0
      %322 = vmatprep.subr.mxu0 0.0
      %323 = vmatpush2.msra.mxu0 0.0
      %324 = vmatprep.subr.mxu0 0.0
      %325 = vmatpush2.msra.mxu0 0.0
      %326 = vmatprep.mubr.f32.mxu0 0.0
      %327 = vmatmul.mubr.f32.gmra.mxu0 %v238
      %v328 = vpop.f32.mrf.mxu0
      %v329 = vadd.f32 0.0, %v328
      %v330 = vpop.f32.mrf.mxu0
      %331 = vmatprep.mubr.f32.mxu0 0.0
      %332 = vmatmul.mubr.f32.gmra.mxu0 %v239
      %v333 = vpop.f32.mrf.mxu0
      %v334 = vadd.f32 0.0, %v333
      %v335 = vpop.f32.mrf.mxu0
      %336 = vmatprep.mubr.f32.mxu0 0.0
      %337 = vmatmul.mubr.f32.gmra.mxu0 %v240
      %v338 = vpop.f32.mrf.mxu0
      %v339 = vadd.f32 0.0, %v338
      %v340 = vpop.f32.mrf.mxu0
      %341 = vmatprep.mubr.f32.mxu0 0.0
      %342 = vmatmul.mubr.f32.gmra.mxu0 %v241
      %v343 = vpop.f32.mrf.mxu0
      %v344 = vadd.f32 0.0, %v343
      %v345 = vpop.f32.mrf.mxu0
      %346 = vmatprep.mubr.f32.mxu0 0.0
      %347 = vmatmul.mubr.f32.gmra.mxu0 %v242
      %v348 = vpop.f32.mrf.mxu0
      %v349 = vadd.f32 0.0, %v348
      %v350 = vpop.f32.mrf.mxu0
      %351 = vmatprep.mubr.f32.mxu0 0.0
      %352 = vmatmul.mubr.f32.gmra.mxu0 %v243
      %v353 = vpop.f32.mrf.mxu0
      %v354 = vadd.f32 0.0, %v353
      %v355 = vpop.f32.mrf.mxu0
      %356 = vmatprep.mubr.f32.mxu0 0.0
      %357 = vmatmul.mubr.f32.gmra.mxu0 %v244
      %v358 = vpop.f32.mrf.mxu0
      %v359 = vadd.f32 0.0, %v358
      %v360 = vpop.f32.mrf.mxu0
      %361 = vmatprep.mubr.f32.mxu0 0.0
      %362 = vmatmul.mubr.f32.gmra.mxu0 %v245
      %v363 = vpop.f32.mrf.mxu0
      %v364 = vadd.f32 0.0, %v363
      %v365 = vpop.f32.mrf.mxu0
      %366 = vdwg.mxu0
      %v367 = vadd.f32 %v230, %v329
      %v368 = vadd.f32 %v231, %v334
      %v369 = vadd.f32 %v232, %v339
      %v370 = vadd.f32 %v233, %v344
      %v371 = vadd.f32 %v234, %v349
      %v372 = vadd.f32 %v235, %v354
      %v373 = vadd.f32 %v236, %v359
      %v374 = vadd.f32 %v237, %v364
      %375 = vst [vmem:[%s216] sm:$0xff] %v367
      %376 = vst [vmem:[%s216 + $0x8] sm:$0xff] %v368
      %377 = vst [vmem:[%s216 + $0x10] sm:$0xff] %v369
      %378 = vst [vmem:[%s216 + $0x18] sm:$0xff] %v370
      %379 = vst [vmem:[%s216 + $0x20] sm:$0xff] %v371
      %380 = vst [vmem:[%s216 + $0x28] sm:$0xff] %v372
      %381 = vst [vmem:[%s216 + $0x30] sm:$0xff] %v373
      %382 = vst [vmem:[%s216 + $0x38] sm:$0xff] %v374
      %s383 = smul.u32 8, %s18
      %p384 = scmp.lt.s32.totalorder %s383, 15
      %s385 = scalar_select %p384, %s383, 15
      %p386 = scmp.lt.s32.totalorder %s19, 0
      %s387 = scalar_select %p386, %s19, 0
      %s388 = sadd.s32 %s387, %s385
      %s389 = smul.addr %s388, 8
      %s390 = scalar_lea.vmem %s2, %s389
      // Predicated region
      $region33: #{cat_mm.2} parent=27 // pred_check
        %p391 = pneg %p108
      $region34: #{cat_mm.2} parent=27 // pred_check_branch
        %393 = sbr.rel (%p391) target = $region36
      $region35: #{cat_mm.2} parent=27 // pred_region
        %s394 = smul.u32 8, %s18
      $region36: #{cat_mm.2} parent=27 // pred_fallthru
        _
    $region28: #{cat_mm.2} parent=5 // pred_fallthru
      _
    %p395 = scmp.le.s32.totalorder 2, %s8
    // Predicated region
    $region37: #{cat_mm.2} parent=5 // pred_check
      %p396 = pneg %p395
    $region38: #{cat_mm.2} parent=5 // pred_check_branch
      %398 = sbr.rel (%p396) target = $region40
    $region39: #{cat_mm.2} parent=5 // pred_region
      %s399 = ssub.s32 %s8, 2
      // Predicated region
      $region41: #{cat_mm.2} parent=39 // pred_check
        %p400 = pneg %p114
      $region42: #{cat_mm.2} parent=39 // pred_check_branch
        %402 = sbr.rel (%p400) target = $region44
      $region43: #{cat_mm.2} parent=39 // pred_region
        %s403 = smul.u32 8, %s21
        %p404 = scmp.lt.s32.totalorder %s403, 15
        %s405 = scalar_select %p404, %s403, 15
        %p406 = scmp.lt.s32.totalorder %s22, 0
        %s407 = scalar_select %p406, %s22, 0
        %s408 = sadd.s32 %s407, %s405
        %s409 = smul.addr %s408, 8
        %s410 = scalar_lea.vmem %s2, %s409
      $region44: #{cat_mm.2} parent=39 // pred_fallthru
        _
    $region40: #{cat_mm.2} parent=5 // pred_fallthru
      _
  $region6: #{cat_mm.2} parent=0 // loop_footer
    %s12 = sadd.s32 1, %s8
  $region7: #{cat_mm.2} parent=0 // loop_footer_branch
    %7 = sbr.rel target = $region3
  $region8: #{cat_mm.2} parent=0 // loop_exit
    _

// kernel: cat_mm.3
$region0: #{cat_mm.3}
  #allocation0 [shape = 'u32[]', space=smem, size = 0x4, offset = 0x4, fixed_abs, tag = 'smem constant byte address 0x4 - core index']
  #allocation1 [shape = 'u32[144,128]{1,0:T(1,128)}', space=vmem, size = 0x12000, scoped, tag = 'internal scratch']
  %s0 = inlined_call_operand.vmem [shape: f32[128,128], index: 0, kind: input, shape index: {}]
  %s1 = inlined_call_operand.vmem [shape: f32[128,256], index: 1, kind: output, shape index: {}]
  %s2 = sld [smem:[#allocation0]]
  $region79: #{cat_mm.3} parent=0
    _
  %s4 = ssub.s32 1, %s2
  %s5 = scalar_select 0, %s4, %s2
  $region1: #{cat_mm.3} parent=0
    #allocation2 [shape = 'u8[131072]{0}', space=vmem, size = 0x20000, scoped, tag = 'output window, operand 0']
    loop: start=0, step=1, limit=4
    $region2: #{cat_mm.3} parent=1 // loop_pre_header
      _
    $region3: #{cat_mm.3} parent=1 // loop_header
      %s7 = sphi 0, %s11
      %p8 = scmp.ge.s32.totalorder %s7, 4
      %s14 = sphi 0, %s26
      %s15 = sphi 0, %s22
      %s16 = sphi 0, %s14
      %s17 = sphi 0, %s15
      %s18 = sphi 0, %s16
      %s19 = sphi 0, %s17
      %s27 = sphi 0, %s27
      %s29 = sphi 0, %s27
      %s30 = sphi 0, %s29
      %s44 = sphi 0, %s30
      %s52 = sphi 0, %s54
      %s55 = sphi 0, %s52
      %s56 = sphi 0, %s55
      %s72 = sphi 0, %s56
    $region4: #{cat_mm.3} parent=1 // loop_header_branch
      %10 = sbr.rel (%p8) target = $region8
    $region5: #{cat_mm.3} parent=1 // loop_body
      %s12 = ssub.s32 %s7, 1
      %s13 = ssub.s32 %s7, 2
      %s20 = sadd.s32 1, %s15
      %p21 = scmp.ge.s32.totalorder %s20, 2
      %s22 = scalar_select %p21, 0, %s20
      %s23 = sadd.s32 1, %s14
      %s24 = scalar_select %p21, %s23, %s14
      %p25 = scmp.ge.s32.totalorder %s24, 1
      %s26 = scalar_select %p25, 0, %s24
      %s28 = sadd.s32 %s27, 1
      %p31 = scmp.eq.s32.totalorder %s7, 1
      %p32 = scmp.ne.s32.totalorder %s27, %s29
      %p33 = scmp.eq.s32.totalorder %s7, 0
      %p34 = por %p32, %p33
      %p35 = scmp.ne.s32.totalorder %s27, %s29
      %p36 = scmp.eq.s32.totalorder %s12, 1
      %p37 = por %p35, %p36
      %p38 = scmp.ne.s32.totalorder %s29, %s30
      %p39 = scmp.eq.s32.totalorder %s12, 0
      %p40 = por %p38, %p39
      %p41 = scmp.ne.s32.totalorder %s29, %s30
      %p42 = scmp.eq.s32.totalorder %s13, 1
      %p43 = por %p41, %p42
      %p45 = scmp.ne.s32.totalorder %s30, %s44
      %p46 = scmp.eq.s32.totalorder %s13, 0
      %p47 = por %p45, %p46
      %s48 = ssub.s32 %s14, %s26
      %s49 = ssub.s32 %s15, %s22
      %s50 = sor.u32 %s48, %s49
      %p51 = scmp.eq.s32.totalorder %s50, 0
      %s53 = sadd.s32 %s52, 1
      %s54 = scalar_select %p51, %s52, %s53
      %p57 = pneg %p51
      %p58 = scmp.eq.s32.totalorder %s7, 1
      %p59 = por %p57, %p58
      %p60 = scmp.ne.s32.totalorder %s52, %s55
      %p61 = scmp.eq.s32.totalorder %s7, 0
      %p62 = por %p60, %p61
      %p63 = scmp.ne.s32.totalorder %s52, %s55
      %p64 = scmp.eq.s32.totalorder %s12, 1
      %p65 = por %p63, %p64
      %p66 = scmp.ne.s32.totalorder %s55, %s56
      %p67 = scmp.eq.s32.totalorder %s12, 0
      %p68 = por %p66, %p67
      %p69 = scmp.ne.s32.totalorder %s55, %s56
      %p70 = scmp.eq.s32.totalorder %s13, 1
      %p71 = por %p69, %p70
      %p73 = scmp.ne.s32.totalorder %s56, %s72
      %p74 = scmp.eq.s32.totalorder %s13, 0
      %p75 = por %p73, %p74
      %p76 = scmp.le.s32.totalorder 1, %s7
      %p77 = scmp.lt.s32.totalorder %s7, 3
      %p78 = pnand %p76, %p77
      %p79 = pneg %p78
      // Predicated region
      $region9: #{cat_mm.3} parent=5 // pred_check
        _
      $region10: #{cat_mm.3} parent=5 // pred_check_branch
        %81 = sbr.rel (%p78) target = $region12
      $region11: #{cat_mm.3} parent=5 // pred_region
        %s82 = ssub.s32 %s7, 1
        // Predicated region
        $region13: #{cat_mm.3} parent=11 // pred_check
          %p83 = pneg %p40
        $region14: #{cat_mm.3} parent=11 // pred_check_branch
          %85 = sbr.rel (%p83) target = $region16
        $region15: #{cat_mm.3} parent=11 // pred_region
          _
        $region16: #{cat_mm.3} parent=11 // pred_fallthru
          _
      $region12: #{cat_mm.3} parent=5 // pred_fallthru
        _
      %p86 = scmp.lt.s32.totalorder %s7, 2
      // Predicated region
      $region17: #{cat_mm.3} parent=5 // pred_check
        %p87 = pneg %p86
      $region18: #{cat_mm.3} parent=5 // pred_check_branch
        %89 = sbr.rel (%p87) target = $region20
      $region19: #{cat_mm.3} parent=5 // pred_region
        _
      $region20: #{cat_mm.3} parent=5 // pred_fallthru
        _
      %p90 = scmp.le.s32.totalorder 1, %s7
      %p91 = scmp.lt.s32.totalorder %s7, 3
      %p92 = pnand %p90, %p91
      %p93 = pneg %p92
      // Predicated region
      $region21: #{cat_mm.3} parent=5 // pred_check
        _
      $region22: #{cat_mm.3} parent=5 // pred_check_branch
        %95 = sbr.rel (%p92) target = $region24
      $region23: #{cat_mm.3} parent=5 // pred_region
        %s96 = ssub.s32 %s7, 1
        %p97 = pneg %p40
        %p98 = pneg %p37
        %p99 = pneg %p68
        %p100 = pneg %p65
        %s101 = sand.u32 %s55, 1
        %s102 = sand.u32 %s55, 1
        %s103 = smul.addr %s102, 128
        %s104 = scalar_lea.vmem [#allocation2], %s103
        %s105 = smul.u32 16, %s16
        %s106 = smul.u32 %s16, 128
        %p107 = scmp.lt.s32.totalorder %s17, 1
        // Predicated region
        $region25: #{cat_mm.3} parent=23 // pred_check
          %p108 = pneg %p107
        $region26: #{cat_mm.3} parent=23 // pred_check_branch
          %110 = sbr.rel (%p108) target = $region28
        $region27: #{cat_mm.3} parent=23 // pred_region
          %s111 = smul.u32 %s17, 128
          %s112 = sshra.s32 %s111, 7
          %s113 = sand.u32 %s111, 127
          %s114 = sadd.s32 %s112, %s106
          %s115 = scalar_lea.vmem %s0, %s114
          %v116 = vld [vmem:[%s115] sm:$0xff]
          %v117 = vld [vmem:[%s115 + $0x8] sm:$0xff]
          %v118 = vld [vmem:[%s115 + $0x10] sm:$0xff]
          %v119 = vld [vmem:[%s115 + $0x18] sm:$0xff]
          %v120 = vld [vmem:[%s115 + $0x20] sm:$0xff]
          %v121 = vld [vmem:[%s115 + $0x28] sm:$0xff]
          %v122 = vld [vmem:[%s115 + $0x30] sm:$0xff]
          %v123 = vld [vmem:[%s115 + $0x38] sm:$0xff]
          %v124 = vld [vmem:[%s115 + $0x40] sm:$0xff]
          %v125 = vld [vmem:[%s115 + $0x48] sm:$0xff]
          %v126 = vld [vmem:[%s115 + $0x50] sm:$0xff]
          %v127 = vld [vmem:[%s115 + $0x58] sm:$0xff]
          %v128 = vld [vmem:[%s115 + $0x60] sm:$0xff]
          %v129 = vld [vmem:[%s115 + $0x68] sm:$0xff]
          %v130 = vld [vmem:[%s115 + $0x70] sm:$0xff]
          %v131 = vld [vmem:[%s115 + $0x78] sm:$0xff]
          %132 = vst [vmem:[%s104] sm:$0xff] %v116
          %133 = vst [vmem:[%s104 + $0x8] sm:$0xff] %v117
          %134 = vst [vmem:[%s104 + $0x10] sm:$0xff] %v118
          %135 = vst [vmem:[%s104 + $0x18] sm:$0xff] %v119
          %136 = vst [vmem:[%s104 + $0x20] sm:$0xff] %v120
          %137 = vst [vmem:[%s104 + $0x28] sm:$0xff] %v121
          %138 = vst [vmem:[%s104 + $0x30] sm:$0xff] %v122
          %139 = vst [vmem:[%s104 + $0x38] sm:$0xff] %v123
          %140 = vst [vmem:[%s104 + $0x40] sm:$0xff] %v124
          %141 = vst [vmem:[%s104 + $0x48] sm:$0xff] %v125
          %142 = vst [vmem:[%s104 + $0x50] sm:$0xff] %v126
          %143 = vst [vmem:[%s104 + $0x58] sm:$0xff] %v127
          %144 = vst [vmem:[%s104 + $0x60] sm:$0xff] %v128
          %145 = vst [vmem:[%s104 + $0x68] sm:$0xff] %v129
          %146 = vst [vmem:[%s104 + $0x70] sm:$0xff] %v130
          %147 = vst [vmem:[%s104 + $0x78] sm:$0xff] %v131
        $region28: #{cat_mm.3} parent=23 // pred_fallthru
          _
        %p148 = scmp.ge.s32.totalorder %s17, 1
        // Predicated region
        $region29: #{cat_mm.3} parent=23 // pred_check
          %p149 = pneg %p148
        $region30: #{cat_mm.3} parent=23 // pred_check_branch
          %151 = sbr.rel (%p149) target = $region32
        $region31: #{cat_mm.3} parent=23 // pred_region
          %s152 = ssub.s32 %s17, 1
          %s153 = smul.u32 %s152, 128
          %s154 = scalar_lea.vmem %s0, %s106
          %v155 = vld [vmem:[%s154] sm:$0xff]
          %v156 = vld [vmem:[%s154 + $0x8] sm:$0xff]
          %v157 = vld [vmem:[%s154 + $0x10] sm:$0xff]
          %v158 = vld [vmem:[%s154 + $0x18] sm:$0xff]
          %v159 = vld [vmem:[%s154 + $0x20] sm:$0xff]
          %v160 = vld [vmem:[%s154 + $0x28] sm:$0xff]
          %v161 = vld [vmem:[%s154 + $0x30] sm:$0xff]
          %v162 = vld [vmem:[%s154 + $0x38] sm:$0xff]
          %v163 = vld [vmem:[%s154 + $0x40] sm:$0xff]
          %v164 = vld [vmem:[%s154 + $0x48] sm:$0xff]
          %v165 = vld [vmem:[%s154 + $0x50] sm:$0xff]
          %v166 = vld [vmem:[%s154 + $0x58] sm:$0xff]
          %v167 = vld [vmem:[%s154 + $0x60] sm:$0xff]
          %v168 = vld [vmem:[%s154 + $0x68] sm:$0xff]
          %v169 = vld [vmem:[%s154 + $0x70] sm:$0xff]
          %v170 = vld [vmem:[%s154 + $0x78] sm:$0xff]
          %s171 = sshra.s32 %s153, 7
          %s172 = sand.u32 %s153, 127
          %s173 = scalar_lea.vmem %s0, %s171
          %v174 = vld [vmem:[%s173] sm:$0xff]
          %v175 = vld [vmem:[%s173 + $0x8] sm:$0xff]
          %v176 = vld [vmem:[%s173 + $0x10] sm:$0xff]
          %v177 = vld [vmem:[%s173 + $0x18] sm:$0xff]
          %v178 = vld [vmem:[%s173 + $0x20] sm:$0xff]
          %v179 = vld [vmem:[%s173 + $0x28] sm:$0xff]
          %v180 = vld [vmem:[%s173 + $0x30] sm:$0xff]
          %v181 = vld [vmem:[%s173 + $0x38] sm:$0xff]
          %v182 = vld [vmem:[%s173 + $0x40] sm:$0xff]
          %v183 = vld [vmem:[%s173 + $0x48] sm:$0xff]
          %v184 = vld [vmem:[%s173 + $0x50] sm:$0xff]
          %v185 = vld [vmem:[%s173 + $0x58] sm:$0xff]
          %v186 = vld [vmem:[%s173 + $0x60] sm:$0xff]
          %v187 = vld [vmem:[%s173 + $0x68] sm:$0xff]
          %v188 = vld [vmem:[%s173 + $0x70] sm:$0xff]
          %v189 = vld [vmem:[%s173 + $0x78] sm:$0xff]
          %190 = vmatprep.subr.mxu0 0.0
          %191 = vmatpush1.msra.mxu0 %v189
          %192 = vmatprep.subr.mxu0 0.0
          %193 = vmatpush1.msra.mxu0 %v188
          %194 = vmatprep.subr.mxu0 0.0
          %195 = vmatpush1.msra.mxu0 %v187
          %196 = vmatprep.subr.mxu0 0.0
          %197 = vmatpush1.msra.mxu0 %v186
          %198 = vmatprep.subr.mxu0 0.0
          %199 = vmatpush1.msra.mxu0 %v185
          %200 = vmatprep.subr.mxu0 0.0
          %201 = vmatpush1.msra.mxu0 %v184
          %202 = vmatprep.subr.mxu0 0.0
          %203 = vmatpush1.msra.mxu0 %v183
          %204 = vmatprep.subr.mxu0 0.0
          %205 = vmatpush1.msra.mxu0 %v182
          %206 = vmatprep.subr.mxu0 0.0
          %207 = vmatpush1.msra.mxu0 %v181
          %208 = vmatprep.subr.mxu0 0.0
          %209 = vmatpush1.msra.mxu0 %v180
          %210 = vmatprep.subr.mxu0 0.0
          %211 = vmatpush1.msra.mxu0 %v179
          %212 = vmatprep.subr.mxu0 0.0
          %213 = vmatpush1.msra.mxu0 %v178
          %214 = vmatprep.subr.mxu0 0.0
          %215 = vmatpush1.msra.mxu0 %v177
          %216 = vmatprep.subr.mxu0 0.0
          %217 = vmatpush1.msra.mxu0 %v176
          %218 = vmatprep.subr.mxu0 0.0
          %219 = vmatpush1.msra.mxu0 %v175
          %220 = vmatprep.subr.mxu0 0.0
          %221 = vmatpush1.msra.mxu0 %v174
          %222 = vmatprep.subr.mxu0 0.0
          %223 = vmatpush2.msra.mxu0 0.0
          %224 = vmatprep.subr.mxu0 0.0
          %225 = vmatpush2.msra.mxu0 0.0
          %226 = vmatprep.subr.mxu0 0.0
          %227 = vmatpush2.msra.mxu0 0.0
          %228 = vmatprep.subr.mxu0 0.0
          %229 = vmatpush2.msra.mxu0 0.0
          %230 = vmatprep.subr.mxu0 0.0
          %231 = vmatpush2.msra.mxu0 0.0
          %232 = vmatprep.subr.mxu0 0.0
          %233 = vmatpush2.msra.mxu0 0.0
          %234 = vmatprep.subr.mxu0 0.0
          %235 = vmatpush2.msra.mxu0 0.0
          %236 = vmatprep.subr.mxu0 0.0
          %237 = vmatpush2.msra.mxu0 0.0
          %238 = vmatprep.subr.mxu0 0.0
          %239 = vmatpush2.msra.mxu0 0.0
          %240 = vmatprep.subr.mxu0 0.0
          %241 = vmatpush2.msra.mxu0 0.0
          %242 = vmatprep.subr.mxu0 0.0
          %243 = vmatpush2.msra.mxu0 0.0
          %244 = vmatprep.subr.mxu0 0.0
          %245 = vmatpush2.msra.mxu0 0.0
          %246 = vmatprep.subr.mxu0 0.0
          %247 = vmatpush2.msra.mxu0 0.0
          %248 = vmatprep.subr.mxu0 0.0
          %249 = vmatpush2.msra.mxu0 0.0
          %250 = vmatprep.subr.mxu0 0.0
          %251 = vmatpush2.msra.mxu0 0.0
          %252 = vmatprep.subr.mxu0 0.0
          %253 = vmatpush2.msra.mxu0 0.0
          %254 = vmatprep.mubr.f32.mxu0 0.0
          %255 = vmatmul.mubr.f32.gmra.mxu0 %v155
          %v256 = vpop.f32.mrf.mxu0
          %v257 = vadd.f32 0.0, %v256
          %v258 = vpop.f32.mrf.mxu0
          %259 = vmatprep.mubr.f32.mxu0 0.0
          %260 = vmatmul.mubr.f32.gmra.mxu0 %v156
          %v261 = vpop.f32.mrf.mxu0
          %v262 = vadd.f32 0.0, %v261
          %v263 = vpop.f32.mrf.mxu0
          %264 = vmatprep.mubr.f32.mxu0 0.0
          %265 = vmatmul.mubr.f32.gmra.mxu0 %v157
          %v266 = vpop.f32.mrf.mxu0
          %v267 = vadd.f32 0.0, %v266
          %v268 = vpop.f32.mrf.mxu0
          %269 = vmatprep.mubr.f32.mxu0 0.0
          %270 = vmatmul.mubr.f32.gmra.mxu0 %v158
          %v271 = vpop.f32.mrf.mxu0
          %v272 = vadd.f32 0.0, %v271
          %v273 = vpop.f32.mrf.mxu0
          %274 = vmatprep.mubr.f32.mxu0 0.0
          %275 = vmatmul.mubr.f32.gmra.mxu0 %v159
          %v276 = vpop.f32.mrf.mxu0
          %v277 = vadd.f32 0.0, %v276
          %v278 = vpop.f32.mrf.mxu0
          %279 = vmatprep.mubr.f32.mxu0 0.0
          %280 = vmatmul.mubr.f32.gmra.mxu0 %v160
          %v281 = vpop.f32.mrf.mxu0
          %v282 = vadd.f32 0.0, %v281
          %v283 = vpop.f32.mrf.mxu0
          %284 = vmatprep.mubr.f32.mxu0 0.0
          %285 = vmatmul.mubr.f32.gmra.mxu0 %v161
          %v286 = vpop.f32.mrf.mxu0
          %v287 = vadd.f32 0.0, %v286
          %v288 = vpop.f32.mrf.mxu0
          %289 = vmatprep.mubr.f32.mxu0 0.0
          %290 = vmatmul.mubr.f32.gmra.mxu0 %v162
          %v291 = vpop.f32.mrf.mxu0
          %v292 = vadd.f32 0.0, %v291
          %v293 = vpop.f32.mrf.mxu0
          %294 = vmatprep.mubr.f32.mxu0 0.0
          %295 = vmatmul.mubr.f32.gmra.mxu0 %v163
          %v296 = vpop.f32.mrf.mxu0
          %v297 = vadd.f32 0.0, %v296
          %v298 = vpop.f32.mrf.mxu0
          %299 = vmatprep.mubr.f32.mxu0 0.0
          %300 = vmatmul.mubr.f32.gmra.mxu0 %v164
          %v301 = vpop.f32.mrf.mxu0
          %v302 = vadd.f32 0.0, %v301
          %v303 = vpop.f32.mrf.mxu0
          %304 = vmatprep.mubr.f32.mxu0 0.0
          %305 = vmatmul.mubr.f32.gmra.mxu0 %v165
          %v306 = vpop.f32.mrf.mxu0
          %v307 = vadd.f32 0.0, %v306
          %v308 = vpop.f32.mrf.mxu0
          %309 = vmatprep.mubr.f32.mxu0 0.0
          %310 = vmatmul.mubr.f32.gmra.mxu0 %v166
          %v311 = vpop.f32.mrf.mxu0
          %v312 = vadd.f32 0.0, %v311
          %v313 = vpop.f32.mrf.mxu0
          %314 = vmatprep.mubr.f32.mxu0 0.0
          %315 = vmatmul.mubr.f32.gmra.mxu0 %v167
          %v316 = vpop.f32.mrf.mxu0
          %v317 = vadd.f32 0.0, %v316
          %v318 = vpop.f32.mrf.mxu0
          %319 = vmatprep.mubr.f32.mxu0 0.0
          %320 = vmatmul.mubr.f32.gmra.mxu0 %v168
          %v321 = vpop.f32.mrf.mxu0
          %v322 = vadd.f32 0.0, %v321
          %v323 = vpop.f32.mrf.mxu0
          %324 = vmatprep.mubr.f32.mxu0 0.0
          %325 = vmatmul.mubr.f32.gmra.mxu0 %v169
          %v326 = vpop.f32.mrf.mxu0
          %v327 = vadd.f32 0.0, %v326
          %v328 = vpop.f32.mrf.mxu0
          %329 = vmatprep.mubr.f32.mxu0 0.0
          %330 = vmatmul.mubr.f32.gmra.mxu0 %v170
          %v331 = vpop.f32.mrf.mxu0
          %v332 = vadd.f32 0.0, %v331
          %v333 = vpop.f32.mrf.mxu0
          %334 = vdwg.mxu0
          %335 = vst [vmem:[%s104] sm:$0xff] %v257
          %336 = vst [vmem:[%s104 + $0x8] sm:$0xff] %v262
          %337 = vst [vmem:[%s104 + $0x10] sm:$0xff] %v267
          %338 = vst [vmem:[%s104 + $0x18] sm:$0xff] %v272
          %339 = vst [vmem:[%s104 + $0x20] sm:$0xff] %v277
          %340 = vst [vmem:[%s104 + $0x28] sm:$0xff] %v282
          %341 = vst [vmem:[%s104 + $0x30] sm:$0xff] %v287
          %342 = vst [vmem:[%s104 + $0x38] sm:$0xff] %v292
          %343 = vst [vmem:[%s104 + $0x40] sm:$0xff] %v297
          %344 = vst [vmem:[%s104 + $0x48] sm:$0xff] %v302
          %345 = vst [vmem:[%s104 + $0x50] sm:$0xff] %v307
          %346 = vst [vmem:[%s104 + $0x58] sm:$0xff] %v312
          %347 = vst [vmem:[%s104 + $0x60] sm:$0xff] %v317
          %348 = vst [vmem:[%s104 + $0x68] sm:$0xff] %v322
          %349 = vst [vmem:[%s104 + $0x70] sm:$0xff] %v327
          %350 = vst [vmem:[%s104 + $0x78] sm:$0xff] %v332
        $region32: #{cat_mm.3} parent=23 // pred_fallthru
          _
        %s351 = sand.u32 %s55, 1
        %s352 = sand.u32 %s55, 1
        %s353 = smul.addr %s352, 128
        %s354 = scalar_lea.vmem [#allocation2], %s353
        // Predicated region
        $region33: #{cat_mm.3} parent=23 // pred_check
          %p355 = pneg %p65
        $region34: #{cat_mm.3} parent=23 // pred_check_branch
          %357 = sbr.rel (%p355) target = $region36
        $region35: #{cat_mm.3} parent=23 // pred_region
          %s358 = smul.u32 16, %s16
          %s359 = smul.addr %s358, 2
          %s360 = sadd.s32 %s17, %s359
          %s361 = smul.addr %s360, 8
          %s362 = scalar_lea.vmem %s1, %s361
          // Predicated region
          $region37: #{cat_mm.3} parent=35 // pred_check
            _
          $region38: #{cat_mm.3} parent=35 // pred_check_branch
            %364 = sbr.rel (0) target = $region40
          $region39: #{cat_mm.3} parent=35 // pred_region
            // Predicated region
            $region41: #{cat_mm.3} parent=39 // pred_check
              _
            $region42: #{cat_mm.3} parent=39 // pred_check_branch
              %366 = sbr.rel (0) target = $region44
            $region43: #{cat_mm.3} parent=39 // pred_region
              // Predicated region
              $region56: #{cat_mm.3} parent=43 // pred_check
                _
              $region57: #{cat_mm.3} parent=43 // pred_check_branch
                %412 = sbr.rel (0) target = $region59
              $region58: #{cat_mm.3} parent=43 // pred_region
                loop: start=0, step=1, limit=1
                $region60: #{cat_mm.3} parent=58 // loop_pre_header
                  _
                $region61: #{cat_mm.3} parent=58 // loop_header
                  %s414 = sphi 0, %s418
                  %p415 = scmp.ge.s32.totalorder %s414, 1
                  %s419 = sphi %s354, %s354
                  %s420 = sphi %s362, %s362
                $region62: #{cat_mm.3} parent=58 // loop_header_branch
                  %417 = sbr.rel (%p415) target = $region66
                $region63: #{cat_mm.3} parent=58 // loop_body
                  %v421 = vld [vmem:[%s419] sm:$0xff]
                  %422 = vst [vmem:[%s420] sm:$0xff] %v421
                  %v423 = vld [vmem:[%s419 + $0x8] sm:$0xff]
                  %424 = vst [vmem:[%s420 + $0x10] sm:$0xff] %v423
                  %v425 = vld [vmem:[%s419 + $0x10] sm:$0xff]
                  %426 = vst [vmem:[%s420 + $0x20] sm:$0xff] %v425
                  %v427 = vld [vmem:[%s419 + $0x18] sm:$0xff]
                  %428 = vst [vmem:[%s420 + $0x30] sm:$0xff] %v427
                  %v429 = vld [vmem:[%s419 + $0x20] sm:$0xff]
                  %430 = vst [vmem:[%s420 + $0x40] sm:$0xff] %v429
                  %v431 = vld [vmem:[%s419 + $0x28] sm:$0xff]
                  %432 = vst [vmem:[%s420 + $0x50] sm:$0xff] %v431
                  %v433 = vld [vmem:[%s419 + $0x30] sm:$0xff]
                  %434 = vst [vmem:[%s420 + $0x60] sm:$0xff] %v433
                  %v435 = vld [vmem:[%s419 + $0x38] sm:$0xff]
                  %436 = vst [vmem:[%s420 + $0x70] sm:$0xff] %v435
                  %v437 = vld [vmem:[%s419 + $0x40] sm:$0xff]
                  %438 = vst [vmem:[%s420 + $0x80] sm:$0xff] %v437
                  %v439 = vld [vmem:[%s419 + $0x48] sm:$0xff]
                  %440 = vst [vmem:[%s420 + $0x90] sm:$0xff] %v439
                  %v441 = vld [vmem:[%s419 + $0x50] sm:$0xff]
                  %442 = vst [vmem:[%s420 + $0xa0] sm:$0xff] %v441
                  %v443 = vld [vmem:[%s419 + $0x58] sm:$0xff]
                  %444 = vst [vmem:[%s420 + $0xb0] sm:$0xff] %v443
                  %v445 = vld [vmem:[%s419 + $0x60] sm:$0xff]
                  %446 = vst [vmem:[%s420 + $0xc0] sm:$0xff] %v445
                  %v447 = vld [vmem:[%s419 + $0x68] sm:$0xff]
                  %448 = vst [vmem:[%s420 + $0xd0] sm:$0xff] %v447
                  %v449 = vld [vmem:[%s419 + $0x70] sm:$0xff]
                  %450 = vst [vmem:[%s420 + $0xe0] sm:$0xff] %v449
                  %v451 = vld [vmem:[%s419 + $0x78] sm:$0xff]
                  %452 = vst [vmem:[%s420 + $0xf0] sm:$0xff] %v451
                $region64: #{cat_mm.3} parent=58 // loop_footer
                  %s418 = sadd.s32 1, %s414
                $region65: #{cat_mm.3} parent=58 // loop_footer_branch
                  %413 = sbr.rel target = $region61
                $region66: #{cat_mm.3} parent=58 // loop_exit
                  _
              $region59: #{cat_mm.3} parent=43 // pred_fallthru
                _
              // Predicated region
              $region67: #{cat_mm.3} parent=43 // pred_check
                _
              $region68: #{cat_mm.3} parent=43 // pred_check_branch
                %454 = sbr.rel target = $region70
              $region69: #{cat_mm.3} parent=43 // pred_region
                _
              $region70: #{cat_mm.3} parent=43 // pred_fallthru
                _
            $region44: #{cat_mm.3} parent=39 // pred_fallthru
              _
            // Predicated region
            $region45: #{cat_mm.3} parent=39 // pred_check
              _
            $region46: #{cat_mm.3} parent=39 // pred_check_branch
              %368 = sbr.rel target = $region48
            $region47: #{cat_mm.3} parent=39 // pred_region
              %s370 = ssub.s32 256, 1
              loop: start=0, step=1, limit=1
              $region49: #{cat_mm.3} parent=47 // loop_pre_header
                _
              $region50: #{cat_mm.3} parent=47 // loop_header
                %s372 = sphi 0, %s376
                %p373 = scmp.ge.s32.totalorder %s372, 1
                %s377 = sphi %s354, %s354
                %s378 = sphi %s362, %s362
              $region51: #{cat_mm.3} parent=47 // loop_header_branch
                %375 = sbr.rel (%p373) target = $region55
              $region52: #{cat_mm.3} parent=47 // loop_body
                %v379 = vld [vmem:[%s377] sm:%s370]
                %380 = vst [vmem:[%s378] sm:%s370] %v379
                %v381 = vld [vmem:[%s377 + $0x8] sm:%s370]
                %382 = vst [vmem:[%s378 + $0x10] sm:%s370] %v381
                %v383 = vld [vmem:[%s377 + $0x10] sm:%s370]
                %384 = vst [vmem:[%s378 + $0x20] sm:%s370] %v383
                %v385 = vld [vmem:[%s377 + $0x18] sm:%s370]
                %386 = vst [vmem:[%s378 + $0x30] sm:%s370] %v385
                %v387 = vld [vmem:[%s377 + $0x20] sm:%s370]
                %388 = vst [vmem:[%s378 + $0x40] sm:%s370] %v387
                %v389 = vld [vmem:[%s377 + $0x28] sm:%s370]
                %390 = vst [vmem:[%s378 + $0x50] sm:%s370] %v389
                %v391 = vld [vmem:[%s377 + $0x30] sm:%s370]
                %392 = vst [vmem:[%s378 + $0x60] sm:%s370] %v391
                %v393 = vld [vmem:[%s377 + $0x38] sm:%s370]
                %394 = vst [vmem:[%s378 + $0x70] sm:%s370] %v393
                %v395 = vld [vmem:[%s377 + $0x40] sm:%s370]
                %396 = vst [vmem:[%s378 + $0x80] sm:%s370] %v395
                %v397 = vld [vmem:[%s377 + $0x48] sm:%s370]
                %398 = vst [vmem:[%s378 + $0x90] sm:%s370] %v397
                %v399 = vld [vmem:[%s377 + $0x50] sm:%s370]
                %400 = vst [vmem:[%s378 + $0xa0] sm:%s370] %v399
                %v401 = vld [vmem:[%s377 + $0x58] sm:%s370]
                %402 = vst [vmem:[%s378 + $0xb0] sm:%s370] %v401
                %v403 = vld [vmem:[%s377 + $0x60] sm:%s370]
                %404 = vst [vmem:[%s378 + $0xc0] sm:%s370] %v403
                %v405 = vld [vmem:[%s377 + $0x68] sm:%s370]
                %406 = vst [vmem:[%s378 + $0xd0] sm:%s370] %v405
                %v407 = vld [vmem:[%s377 + $0x70] sm:%s370]
                %408 = vst [vmem:[%s378 + $0xe0] sm:%s370] %v407
                %v409 = vld [vmem:[%s377 + $0x78] sm:%s370]
                %410 = vst [vmem:[%s378 + $0xf0] sm:%s370] %v409
              $region53: #{cat_mm.3} parent=47 // loop_footer
                %s376 = sadd.s32 1, %s372
              $region54: #{cat_mm.3} parent=47 // loop_footer_branch
                %371 = sbr.rel target = $region50
              $region55: #{cat_mm.3} parent=47 // loop_exit
                _
            $region48: #{cat_mm.3} parent=39 // pred_fallthru
              _
          $region40: #{cat_mm.3} parent=35 // pred_fallthru
            _
          %455 = vnop
        $region36: #{cat_mm.3} parent=23 // pred_fallthru
          _
      $region24: #{cat_mm.3} parent=5 // pred_fallthru
        _
      %p456 = scmp.le.s32.totalorder 2, %s7
      // Predicated region
      $region71: #{cat_mm.3} parent=5 // pred_check
        %p457 = pneg %p456
      $region72: #{cat_mm.3} parent=5 // pred_check_branch
        %459 = sbr.rel (%p457) target = $region74
      $region73: #{cat_mm.3} parent=5 // pred_region
        %s460 = ssub.s32 %s7, 2
        // Predicated region
        $region75: #{cat_mm.3} parent=73 // pred_check
          %p461 = pneg %p71
        $region76: #{cat_mm.3} parent=73 // pred_check_branch
          %463 = sbr.rel (%p461) target = $region78
        $region77: #{cat_mm.3} parent=73 // pred_region
          %s464 = sand.u32 %s56, 1
          %s465 = sand.u32 %s56, 1
          %s466 = smul.addr %s465, 128
          %s467 = scalar_lea.vmem [#allocation2], %s466
        $region78: #{cat_mm.3} parent=73 // pred_fallthru
          _
      $region74: #{cat_mm.3} parent=5 // pred_fallthru
        _
    $region6: #{cat_mm.3} parent=1 // loop_footer
      %s11 = sadd.s32 1, %s7
    $region7: #{cat_mm.3} parent=1 // loop_footer_branch
      %6 = sbr.rel target = $region3
    $region8: #{cat_mm.3} parent=1 // loop_exit
      _

</llo_original>
